<compile_context>
chip_gen: v6e
topology: v6e:2x2x1
jax: 0.10.0
libtpu: 0.0.40
codegen_flags: <defaults>
</compile_context>

<pallas_src>
import jax
import jax.numpy as jnp
from jax.experimental import pallas as pl
from jax.experimental.pallas import tpu as pltpu


def _round_up(x, m):
    return ((x + m - 1) // m) * m


def _patch_embed_kernel(p_ref, w_ref, b_ref, o_ref):
    # p_ref: (TM, K) bf16 patches, w_ref: (K, N) bf16 projection (resident),
    # b_ref: (1, N) f32 bias (resident), o_ref: (TM, N) output tile.
    acc = jnp.dot(p_ref[...], w_ref[...], preferred_element_type=jnp.float32)
    o_ref[...] = (acc + b_ref[...]).astype(o_ref.dtype)


def patch_embed(x, weight, bias, kernel_size=(16, 16), stride=(16, 16),
                tm_max=1024):
    """x: (B, C, H, W) (NCHW, like PyTorch).
    weight: (embed_dim, C, kh, kw), bias: (embed_dim,).
    Returns (B, H', W', embed_dim) in x.dtype (PyTorch output layout)."""
    assert kernel_size == stride, "PatchEmbed uses kernel_size == stride"
    B, C, H, W = x.shape
    kh, kw = kernel_size
    assert H % kh == 0 and W % kw == 0
    Hp, Wp = H // kh, W // kw
    embed_dim = weight.shape[0]

    M = B * Hp * Wp
    K = C * kh * kw
    N_pad = _round_up(embed_dim, 128)  # lane-dense output stores (no masked vst)

    # The op is HBM-bandwidth-bound: compute in bf16 (native MXU path, half
    # the bytes), accumulate in f32, add bias in f32, cast back to x.dtype.
    # Cast *before* the reshape/transpose so the materialized patch copy is
    # half-size.
    xc = x.astype(jnp.bfloat16)
    # TODO(synk): fuse the patch extraction into the kernel (raw NCHW input +
    # in-VMEM rearrangement) to remove this wrapper-side HBM round trip.
    patches = xc.reshape(B, C, Hp, kh, Wp, kw).transpose(0, 2, 4, 1, 3, 5)
    patches = patches.reshape(M, K)

    # Tile M; pad to a whole number of tiles so every block is layout-aligned
    # (multiples of 128 keep both the bf16 sublane packing and the MXU happy
    # on v5e/v6e/v7x).
    if M >= tm_max:
        TM = tm_max
    else:
        TM = _round_up(M, 128)
    M_pad = _round_up(M, TM)
    if M_pad != M:
        patches = jnp.pad(patches, ((0, M_pad - M), (0, 0)))

    # Conv weight flattened as (embed_dim, C*kh*kw) -> (K, N) for P @ W^T.
    w_mat = weight.reshape(embed_dim, K).T.astype(jnp.bfloat16)
    b_mat = bias.astype(jnp.float32).reshape(1, embed_dim)
    if N_pad != embed_dim:
        w_mat = jnp.pad(w_mat, ((0, 0), (0, N_pad - embed_dim)))
        b_mat = jnp.pad(b_mat, ((0, 0), (0, N_pad - embed_dim)))

    grid = (M_pad // TM,)
    out_itemsize = jnp.dtype(x.dtype).itemsize
    cost = pl.CostEstimate(
        flops=2 * M_pad * K * N_pad,
        bytes_accessed=(M_pad * K + K * N_pad) * 2 + M_pad * N_pad * out_itemsize,
        transcendentals=0,
    )

    out = pl.pallas_call(
        _patch_embed_kernel,
        out_shape=jax.ShapeDtypeStruct((M_pad, N_pad), x.dtype),
        grid_spec=pltpu.PrefetchScalarGridSpec(
            num_scalar_prefetch=0,
            grid=grid,
            in_specs=[
                pl.BlockSpec((TM, K), lambda i: (i, 0)),        # streamed per tile
                pl.BlockSpec((K, N_pad), lambda i: (0, 0)),     # weights stay resident
                pl.BlockSpec((1, N_pad), lambda i: (0, 0)),     # bias stays resident
            ],
            out_specs=pl.BlockSpec((TM, N_pad), lambda i: (i, 0)),
        ),
        compiler_params=pltpu.CompilerParams(
            # v7x: shard M tiles across the 2 TensorCores; no-op on v5e/v6e.
            dimension_semantics=("parallel",),
        ),
        cost_estimate=cost,
    )(patches, w_mat, b_mat)

    out = out[:M, :embed_dim]
    return out.reshape(B, Hp, Wp, embed_dim)


if __name__ == "__main__":
    # Small shapes consistent with the module: in_chans=3, 16x16 patches,
    # embed_dim=128 (lane-aligned), image 2 x 3 x 64 x 64 -> 4x4 patch grid.
    key = jax.random.PRNGKey(0)
    k_x, k_w, k_b = jax.random.split(key, 3)

    B, C, H, W = 2, 3, 64, 64
    kh, kw = 16, 16
    embed_dim = 128

    x = jax.random.normal(k_x, (B, C, H, W), dtype=jnp.float32)
    weight = jax.random.normal(k_w, (embed_dim, C, kh, kw), dtype=jnp.float32) * 0.02
    bias = jax.random.normal(k_b, (embed_dim,), dtype=jnp.float32) * 0.02

    out = patch_embed(x, weight, bias, kernel_size=(kh, kw), stride=(kh, kw))
    out = jax.block_until_ready(out)

    # Reference check against lax conv (same semantics as nn.Conv2d) + permute.
    ref = jax.lax.conv_general_dilated(
        x, weight, window_strides=(kh, kw), padding="VALID",
        dimension_numbers=("NCHW", "OIHW", "NCHW"))
    ref = ref + bias[None, :, None, None]
    ref = jnp.transpose(ref, (0, 2, 3, 1))
    assert out.shape == (B, H // kh, W // kw, embed_dim), out.shape
    # bf16 compute path -> looser tolerance than pure-f32.
    assert jnp.allclose(out, ref, atol=2e-2, rtol=2e-2)

    print("KERNEL_OK")
</pallas_src>

<mosaic_0001>
module attributes {stable_mosaic.version = 11 : i64} {
  func.func @_patch_embed_kernel(%arg0: i32, %arg1: memref<128x768xbf16, #tpu.memory_space<vmem>>, %arg2: memref<768x128xbf16, #tpu.memory_space<vmem>>, %arg3: memref<1x128xf32, #tpu.memory_space<vmem>>, %arg4: memref<128x128xf32, #tpu.memory_space<vmem>>) attributes {dimension_semantics = [#tpu.dimension_semantics<parallel>], iteration_bounds = array<i64: 1>, scalar_prefetch = 0 : i64, scratch_operands = 0 : i64, tpu.core_type = #tpu.core_type<tc>, window_params = [{transform_indices = @transform_0, window_bounds = array<i64: 128, 768>}, {pipeline_mode = #tpu.pipeline_mode<synchronous>, transform_indices = @transform_1, window_bounds = array<i64: 768, 128>}, {pipeline_mode = #tpu.pipeline_mode<synchronous>, transform_indices = @transform_2, window_bounds = array<i64: 1, 128>}, {transform_indices = @transform_3, window_bounds = array<i64: 128, 128>}]} {
    %c0 = arith.constant 0 : index
    %c0_0 = arith.constant 0 : index
    %0 = vector.load %arg1[%c0, %c0_0] : memref<128x768xbf16, #tpu.memory_space<vmem>>, vector<128x768xbf16>
    %c0_1 = arith.constant 0 : index
    %c0_2 = arith.constant 0 : index
    %1 = vector.load %arg2[%c0_1, %c0_2] : memref<768x128xbf16, #tpu.memory_space<vmem>>, vector<768x128xbf16>
    %cst = arith.constant dense<0.000000e+00> : vector<128x128xf32>
    %2 = tpu.matmul %0, %1, %cst {dimension_numbers = #tpu.dot_dimension_numbers<[1], [0], [0], [1], [0, 0, 1, 1], [], []>} : vector<128x768xbf16>, vector<768x128xbf16>, vector<128x128xf32> -> vector<128x128xf32>
    %c0_3 = arith.constant 0 : index
    %c0_4 = arith.constant 0 : index
    %3 = vector.load %arg3[%c0_3, %c0_4] : memref<1x128xf32, #tpu.memory_space<vmem>>, vector<1x128xf32>
    %4 = vector.broadcast %3 : vector<1x128xf32> to vector<128x128xf32>
    %5 = arith.addf %2, %4 : vector<128x128xf32>
    %c0_5 = arith.constant 0 : index
    %c0_6 = arith.constant 0 : index
    %6 = vector.load %arg4[%c0_5, %c0_6] : memref<128x128xf32, #tpu.memory_space<vmem>>, vector<128x128xf32>
    tpu.vector_store %arg4[%c0_5, %c0_6], %5 {strides = array<i32>} : memref<128x128xf32, #tpu.memory_space<vmem>>, vector<128x128xf32>,
    return
  }
  func.func @transform_0(%arg0: i32) -> (i32, i32) {
    %c0_i32 = arith.constant 0 : i32
    %c0_i32_0 = arith.constant 0 : i32
    return %arg0, %c0_i32 : i32, i32
  }
  func.func @transform_1(%arg0: i32) -> (i32, i32) {
    %c0_i32 = arith.constant 0 : i32
    %c0_i32_0 = arith.constant 0 : i32
    %c0_i32_1 = arith.constant 0 : i32
    return %c0_i32, %c0_i32_0 : i32, i32
  }
  func.func @transform_2(%arg0: i32) -> (i32, i32) {
    %c0_i32 = arith.constant 0 : i32
    %c0_i32_0 = arith.constant 0 : i32
    %c0_i32_1 = arith.constant 0 : i32
    return %c0_i32, %c0_i32_0 : i32, i32
  }
  func.func @transform_3(%arg0: i32) -> (i32, i32) {
    %c0_i32 = arith.constant 0 : i32
    %c0_i32_0 = arith.constant 0 : i32
    return %arg0, %c0_i32 : i32, i32
  }
}

</mosaic_0001>

<llo_original>
// kernel: tpu_custom_call.1
$region0: #{tpu_custom_call.1}
  #allocation0 [shape = 'u32[]', space=smem, size = 0x4, offset = 0x4, fixed_abs, tag = 'smem constant byte address 0x4 - core index']
  #allocation1 [shape = 'u32[144,128]{1,0:T(1,128)}', space=vmem, size = 0x12000, scoped, tag = 'internal scratch']
  %s0 = inlined_call_operand.hbm [shape: bf16[128,768], index: 0, kind: input, shape index: {}]
  %s1 = inlined_call_operand.hbm [shape: bf16[768,128], index: 1, kind: input, shape index: {}]
  %s2 = inlined_call_operand.vmem [shape: f32[1,128], index: 2, kind: input, shape index: {}]
  %s3 = inlined_call_operand.hbm [shape: f32[128,128], index: 3, kind: output, shape index: {}]
  %s4 = sld [smem:[#allocation0]]
  $region30: #{tpu_custom_call.1} parent=0
    _
  %s6 = ssub.s32 1, %s4
  %s7 = scalar_select 0, %s6, %s4
  $region1: #{tpu_custom_call.1} parent=0
    #allocation2 [shape = 'u8[196608]{0}', space=vmem, size = 0x30000, scoped, tag = 'input window, operand 0, single buffered']
    #allocation3 [shape = 's32[1]{0}', space=sflag, size = 0x4, scoped, tag = 'scoped memory for tpu_custom_call.1']
    #allocation4 [shape = 's32[1]{0}', space=sflag, size = 0x4, scoped, tag = 'scoped memory for tpu_custom_call.1']
    #allocation5 [shape = 'u8[196608]{0}', space=vmem, size = 0x30000, scoped, tag = 'input window, operand 1, single buffered']
    #allocation6 [shape = 's32[1]{0}', space=sflag, size = 0x4, scoped, tag = 'scoped memory for tpu_custom_call.1']
    #allocation7 [shape = 'u8[65536]{0}', space=vmem, size = 0x10000, scoped, tag = 'output window, operand 0, single buffered']
    %8 = vsyncpa [#allocation3], 0
    %9 = vsyncpa [#allocation6], 0
    %10 = vsyncpa [#allocation4], 0
    // Predicated region
    $region2: #{tpu_custom_call.1} parent=1 // pred_check
      _
    $region3: #{tpu_custom_call.1} parent=1 // pred_check_branch
      %12 = sbr.rel (0) target = $region5
    $region4: #{tpu_custom_call.1} parent=1 // pred_region
      %s14 = ssub.s32 6144, 6144
      %15 = vsyncadd [#allocation3], %s14
      %s16 = sshll.u32 [#allocation2], 4
      %s17 = int_to_ptr.vmem [resolvable:$true] %s16
      %22 = dma.hbm_to_vmem [thread:$0]  %s0, 6144, %s17, [#allocation3], 384, 384, 24
    $region5: #{tpu_custom_call.1} parent=1 // pred_fallthru
      _
    // Predicated region
    $region6: #{tpu_custom_call.1} parent=1 // pred_check
      _
    $region7: #{tpu_custom_call.1} parent=1 // pred_check_branch
      %24 = sbr.rel (0) target = $region9
    $region8: #{tpu_custom_call.1} parent=1 // pred_region
      %s26 = ssub.s32 6144, 6144
      %27 = vsyncadd [#allocation6], %s26
      %s28 = sshll.u32 [#allocation5], 4
      %s29 = int_to_ptr.vmem [resolvable:$true] %s28
      %34 = dma.hbm_to_vmem [thread:$0]  %s1, 6144, %s29, [#allocation6], 64, 64, 4
    $region9: #{tpu_custom_call.1} parent=1 // pred_fallthru
      _
    // Predicated region
    $region10: #{tpu_custom_call.1} parent=1 // pred_check
      _
    $region11: #{tpu_custom_call.1} parent=1 // pred_check_branch
      %36 = sbr.rel (0) target = $region13
    $region12: #{tpu_custom_call.1} parent=1 // pred_region
      _
    $region13: #{tpu_custom_call.1} parent=1 // pred_fallthru
      _
    // Predicated region
    $region14: #{tpu_custom_call.1} parent=1 // pred_check
      _
    $region15: #{tpu_custom_call.1} parent=1 // pred_check_branch
      %38 = sbr.rel (0) target = $region17
    $region16: #{tpu_custom_call.1} parent=1 // pred_region
      %39 = dma.done [#allocation3], 6144
    $region17: #{tpu_custom_call.1} parent=1 // pred_fallthru
      _
    // Predicated region
    $region18: #{tpu_custom_call.1} parent=1 // pred_check
      _
    $region19: #{tpu_custom_call.1} parent=1 // pred_check_branch
      %41 = sbr.rel (0) target = $region21
    $region20: #{tpu_custom_call.1} parent=1 // pred_region
      %42 = dma.done [#allocation6], 6144
    $region21: #{tpu_custom_call.1} parent=1 // pred_fallthru
      _
    %v44 = vld [vmem:[#allocation2] sm:$0xff]
    %v45 = vld [vmem:[#allocation2 + $0x8] sm:$0xff]
    %v46 = vld [vmem:[#allocation2 + $0x10] sm:$0xff]
    %v47 = vld [vmem:[#allocation2 + $0x18] sm:$0xff]
    %v48 = vld [vmem:[#allocation2 + $0x20] sm:$0xff]
    %v49 = vld [vmem:[#allocation2 + $0x28] sm:$0xff]
    %v50 = vld [vmem:[#allocation2 + $0x30] sm:$0xff]
    %v51 = vld [vmem:[#allocation2 + $0x38] sm:$0xff]
    %v52 = vld [vmem:[#allocation2 + $0x40] sm:$0xff]
    %v53 = vld [vmem:[#allocation2 + $0x48] sm:$0xff]
    %v54 = vld [vmem:[#allocation2 + $0x50] sm:$0xff]
    %v55 = vld [vmem:[#allocation2 + $0x58] sm:$0xff]
    %v56 = vld [vmem:[#allocation2 + $0x60] sm:$0xff]
    %v57 = vld [vmem:[#allocation2 + $0x68] sm:$0xff]
    %v58 = vld [vmem:[#allocation2 + $0x70] sm:$0xff]
    %v59 = vld [vmem:[#allocation2 + $0x78] sm:$0xff]
    %v60 = vld [vmem:[#allocation2 + $0x80] sm:$0xff]
    %v61 = vld [vmem:[#allocation2 + $0x88] sm:$0xff]
    %v62 = vld [vmem:[#allocation2 + $0x90] sm:$0xff]
    %v63 = vld [vmem:[#allocation2 + $0x98] sm:$0xff]
    %v64 = vld [vmem:[#allocation2 + $0xa0] sm:$0xff]
    %v65 = vld [vmem:[#allocation2 + $0xa8] sm:$0xff]
    %v66 = vld [vmem:[#allocation2 + $0xb0] sm:$0xff]
    %v67 = vld [vmem:[#allocation2 + $0xb8] sm:$0xff]
    %v68 = vld [vmem:[#allocation2 + $0xc0] sm:$0xff]
    %v69 = vld [vmem:[#allocation2 + $0xc8] sm:$0xff]
    %v70 = vld [vmem:[#allocation2 + $0xd0] sm:$0xff]
    %v71 = vld [vmem:[#allocation2 + $0xd8] sm:$0xff]
    %v72 = vld [vmem:[#allocation2 + $0xe0] sm:$0xff]
    %v73 = vld [vmem:[#allocation2 + $0xe8] sm:$0xff]
    %v74 = vld [vmem:[#allocation2 + $0xf0] sm:$0xff]
    %v75 = vld [vmem:[#allocation2 + $0xf8] sm:$0xff]
    %v76 = vld [vmem:[#allocation2 + $0x100] sm:$0xff]
    %v77 = vld [vmem:[#allocation2 + $0x108] sm:$0xff]
    %v78 = vld [vmem:[#allocation2 + $0x110] sm:$0xff]
    %v79 = vld [vmem:[#allocation2 + $0x118] sm:$0xff]
    %v80 = vld [vmem:[#allocation2 + $0x120] sm:$0xff]
    %v81 = vld [vmem:[#allocation2 + $0x128] sm:$0xff]
    %v82 = vld [vmem:[#allocation2 + $0x130] sm:$0xff]
    %v83 = vld [vmem:[#allocation2 + $0x138] sm:$0xff]
    %v84 = vld [vmem:[#allocation2 + $0x140] sm:$0xff]
    %v85 = vld [vmem:[#allocation2 + $0x148] sm:$0xff]
    %v86 = vld [vmem:[#allocation2 + $0x150] sm:$0xff]
    %v87 = vld [vmem:[#allocation2 + $0x158] sm:$0xff]
    %v88 = vld [vmem:[#allocation2 + $0x160] sm:$0xff]
    %v89 = vld [vmem:[#allocation2 + $0x168] sm:$0xff]
    %v90 = vld [vmem:[#allocation2 + $0x170] sm:$0xff]
    %v91 = vld [vmem:[#allocation2 + $0x178] sm:$0xff]
    %v92 = vld [vmem:[#allocation5] sm:$0xf]
    %v93 = vld [vmem:[#allocation5 + $0x4] sm:$0xf]
    %v94 = vld [vmem:[#allocation5 + $0x8] sm:$0xf]
    %v95 = vld [vmem:[#allocation5 + $0xc] sm:$0xf]
    %v96 = vld [vmem:[#allocation5 + $0x10] sm:$0xf]
    %v97 = vld [vmem:[#allocation5 + $0x14] sm:$0xf]
    %v98 = vld [vmem:[#allocation5 + $0x18] sm:$0xf]
    %v99 = vld [vmem:[#allocation5 + $0x1c] sm:$0xf]
    %v100 = vld [vmem:[#allocation5 + $0x20] sm:$0xf]
    %v101 = vld [vmem:[#allocation5 + $0x24] sm:$0xf]
    %v102 = vld [vmem:[#allocation5 + $0x28] sm:$0xf]
    %v103 = vld [vmem:[#allocation5 + $0x2c] sm:$0xf]
    %v104 = vld [vmem:[#allocation5 + $0x30] sm:$0xf]
    %v105 = vld [vmem:[#allocation5 + $0x34] sm:$0xf]
    %v106 = vld [vmem:[#allocation5 + $0x38] sm:$0xf]
    %v107 = vld [vmem:[#allocation5 + $0x3c] sm:$0xf]
    %v108 = vld [vmem:[#allocation5 + $0x40] sm:$0xf]
    %v109 = vld [vmem:[#allocation5 + $0x44] sm:$0xf]
    %v110 = vld [vmem:[#allocation5 + $0x48] sm:$0xf]
    %v111 = vld [vmem:[#allocation5 + $0x4c] sm:$0xf]
    %v112 = vld [vmem:[#allocation5 + $0x50] sm:$0xf]
    %v113 = vld [vmem:[#allocation5 + $0x54] sm:$0xf]
    %v114 = vld [vmem:[#allocation5 + $0x58] sm:$0xf]
    %v115 = vld [vmem:[#allocation5 + $0x5c] sm:$0xf]
    %v116 = vld [vmem:[#allocation5 + $0x60] sm:$0xf]
    %v117 = vld [vmem:[#allocation5 + $0x64] sm:$0xf]
    %v118 = vld [vmem:[#allocation5 + $0x68] sm:$0xf]
    %v119 = vld [vmem:[#allocation5 + $0x6c] sm:$0xf]
    %v120 = vld [vmem:[#allocation5 + $0x70] sm:$0xf]
    %v121 = vld [vmem:[#allocation5 + $0x74] sm:$0xf]
    %v122 = vld [vmem:[#allocation5 + $0x78] sm:$0xf]
    %v123 = vld [vmem:[#allocation5 + $0x7c] sm:$0xf]
    %v124 = vld [vmem:[#allocation5 + $0x80] sm:$0xf]
    %v125 = vld [vmem:[#allocation5 + $0x84] sm:$0xf]
    %v126 = vld [vmem:[#allocation5 + $0x88] sm:$0xf]
    %v127 = vld [vmem:[#allocation5 + $0x8c] sm:$0xf]
    %v128 = vld [vmem:[#allocation5 + $0x90] sm:$0xf]
    %v129 = vld [vmem:[#allocation5 + $0x94] sm:$0xf]
    %v130 = vld [vmem:[#allocation5 + $0x98] sm:$0xf]
    %v131 = vld [vmem:[#allocation5 + $0x9c] sm:$0xf]
    %v132 = vld [vmem:[#allocation5 + $0xa0] sm:$0xf]
    %v133 = vld [vmem:[#allocation5 + $0xa4] sm:$0xf]
    %v134 = vld [vmem:[#allocation5 + $0xa8] sm:$0xf]
    %v135 = vld [vmem:[#allocation5 + $0xac] sm:$0xf]
    %v136 = vld [vmem:[#allocation5 + $0xb0] sm:$0xf]
    %v137 = vld [vmem:[#allocation5 + $0xb4] sm:$0xf]
    %v138 = vld [vmem:[#allocation5 + $0xb8] sm:$0xf]
    %v139 = vld [vmem:[#allocation5 + $0xbc] sm:$0xf]
    %v140 = vld [vmem:[#allocation5 + $0xc0] sm:$0xf]
    %v141 = vld [vmem:[#allocation5 + $0xc4] sm:$0xf]
    %v142 = vld [vmem:[#allocation5 + $0xc8] sm:$0xf]
    %v143 = vld [vmem:[#allocation5 + $0xcc] sm:$0xf]
    %v144 = vld [vmem:[#allocation5 + $0xd0] sm:$0xf]
    %v145 = vld [vmem:[#allocation5 + $0xd4] sm:$0xf]
    %v146 = vld [vmem:[#allocation5 + $0xd8] sm:$0xf]
    %v147 = vld [vmem:[#allocation5 + $0xdc] sm:$0xf]
    %v148 = vld [vmem:[#allocation5 + $0xe0] sm:$0xf]
    %v149 = vld [vmem:[#allocation5 + $0xe4] sm:$0xf]
    %v150 = vld [vmem:[#allocation5 + $0xe8] sm:$0xf]
    %v151 = vld [vmem:[#allocation5 + $0xec] sm:$0xf]
    %v152 = vld [vmem:[#allocation5 + $0xf0] sm:$0xf]
    %v153 = vld [vmem:[#allocation5 + $0xf4] sm:$0xf]
    %v154 = vld [vmem:[#allocation5 + $0xf8] sm:$0xf]
    %v155 = vld [vmem:[#allocation5 + $0xfc] sm:$0xf]
    %v156 = vld [vmem:[#allocation5 + $0x100] sm:$0xf]
    %v157 = vld [vmem:[#allocation5 + $0x104] sm:$0xf]
    %v158 = vld [vmem:[#allocation5 + $0x108] sm:$0xf]
    %v159 = vld [vmem:[#allocation5 + $0x10c] sm:$0xf]
    %v160 = vld [vmem:[#allocation5 + $0x110] sm:$0xf]
    %v161 = vld [vmem:[#allocation5 + $0x114] sm:$0xf]
    %v162 = vld [vmem:[#allocation5 + $0x118] sm:$0xf]
    %v163 = vld [vmem:[#allocation5 + $0x11c] sm:$0xf]
    %v164 = vld [vmem:[#allocation5 + $0x120] sm:$0xf]
    %v165 = vld [vmem:[#allocation5 + $0x124] sm:$0xf]
    %v166 = vld [vmem:[#allocation5 + $0x128] sm:$0xf]
    %v167 = vld [vmem:[#allocation5 + $0x12c] sm:$0xf]
    %v168 = vld [vmem:[#allocation5 + $0x130] sm:$0xf]
    %v169 = vld [vmem:[#allocation5 + $0x134] sm:$0xf]
    %v170 = vld [vmem:[#allocation5 + $0x138] sm:$0xf]
    %v171 = vld [vmem:[#allocation5 + $0x13c] sm:$0xf]
    %v172 = vld [vmem:[#allocation5 + $0x140] sm:$0xf]
    %v173 = vld [vmem:[#allocation5 + $0x144] sm:$0xf]
    %v174 = vld [vmem:[#allocation5 + $0x148] sm:$0xf]
    %v175 = vld [vmem:[#allocation5 + $0x14c] sm:$0xf]
    %v176 = vld [vmem:[#allocation5 + $0x150] sm:$0xf]
    %v177 = vld [vmem:[#allocation5 + $0x154] sm:$0xf]
    %v178 = vld [vmem:[#allocation5 + $0x158] sm:$0xf]
    %v179 = vld [vmem:[#allocation5 + $0x15c] sm:$0xf]
    %v180 = vld [vmem:[#allocation5 + $0x160] sm:$0xf]
    %v181 = vld [vmem:[#allocation5 + $0x164] sm:$0xf]
    %v182 = vld [vmem:[#allocation5 + $0x168] sm:$0xf]
    %v183 = vld [vmem:[#allocation5 + $0x16c] sm:$0xf]
    %v184 = vld [vmem:[#allocation5 + $0x170] sm:$0xf]
    %v185 = vld [vmem:[#allocation5 + $0x174] sm:$0xf]
    %v186 = vld [vmem:[#allocation5 + $0x178] sm:$0xf]
    %v187 = vld [vmem:[#allocation5 + $0x17c] sm:$0xf]
    %v188 = vld [vmem:[%s2] sm:$0x1]
    %v190 = vlaneseq
    %v191 = vshrl.u32 %v190, 7
    %v192 = vsub.s32 0, %v191
    %v193 = vrot.slane %v188, %v192
    %v243 = vunpack.c.l.b16 %v44
    %v244 = vunpack.c.h.b16 %v44
    %v245 = vunpack.c.l.b16 %v45
    %v246 = vunpack.c.h.b16 %v45
    %v247 = vunpack.c.l.b16 %v46
    %v248 = vunpack.c.h.b16 %v46
    %v249 = vunpack.c.l.b16 %v47
    %v250 = vunpack.c.h.b16 %v47
    %v251 = vunpack.c.l.b16 %v48
    %v252 = vunpack.c.h.b16 %v48
    %v253 = vunpack.c.l.b16 %v49
    %v254 = vunpack.c.h.b16 %v49
    %v255 = vunpack.c.l.b16 %v50
    %v256 = vunpack.c.h.b16 %v50
    %v257 = vunpack.c.l.b16 %v51
    %v258 = vunpack.c.h.b16 %v51
    %v259 = vunpack.c.l.b16 %v52
    %v260 = vunpack.c.h.b16 %v52
    %v261 = vunpack.c.l.b16 %v53
    %v262 = vunpack.c.h.b16 %v53
    %v263 = vunpack.c.l.b16 %v54
    %v264 = vunpack.c.h.b16 %v54
    %v265 = vunpack.c.l.b16 %v55
    %v266 = vunpack.c.h.b16 %v55
    %v267 = vunpack.c.l.b16 %v56
    %v268 = vunpack.c.h.b16 %v56
    %v269 = vunpack.c.l.b16 %v57
    %v270 = vunpack.c.h.b16 %v57
    %v271 = vunpack.c.l.b16 %v58
    %v272 = vunpack.c.h.b16 %v58
    %v273 = vunpack.c.l.b16 %v59
    %v274 = vunpack.c.h.b16 %v59
    %v275 = vunpack.c.l.b16 %v60
    %v276 = vunpack.c.h.b16 %v60
    %v277 = vunpack.c.l.b16 %v61
    %v278 = vunpack.c.h.b16 %v61
    %v279 = vunpack.c.l.b16 %v62
    %v280 = vunpack.c.h.b16 %v62
    %v281 = vunpack.c.l.b16 %v63
    %v282 = vunpack.c.h.b16 %v63
    %v283 = vunpack.c.l.b16 %v64
    %v284 = vunpack.c.h.b16 %v64
    %v285 = vunpack.c.l.b16 %v65
    %v286 = vunpack.c.h.b16 %v65
    %v287 = vunpack.c.l.b16 %v66
    %v288 = vunpack.c.h.b16 %v66
    %v289 = vunpack.c.l.b16 %v67
    %v290 = vunpack.c.h.b16 %v67
    %v291 = vunpack.c.l.b16 %v68
    %v292 = vunpack.c.h.b16 %v68
    %v293 = vunpack.c.l.b16 %v69
    %v294 = vunpack.c.h.b16 %v69
    %v295 = vunpack.c.l.b16 %v70
    %v296 = vunpack.c.h.b16 %v70
    %v297 = vunpack.c.l.b16 %v71
    %v298 = vunpack.c.h.b16 %v71
    %v299 = vunpack.c.l.b16 %v72
    %v300 = vunpack.c.h.b16 %v72
    %v301 = vunpack.c.l.b16 %v73
    %v302 = vunpack.c.h.b16 %v73
    %v303 = vunpack.c.l.b16 %v74
    %v304 = vunpack.c.h.b16 %v74
    %v305 = vunpack.c.l.b16 %v75
    %v306 = vunpack.c.h.b16 %v75
    %v307 = vunpack.c.l.b16 %v76
    %v308 = vunpack.c.h.b16 %v76
    %v309 = vunpack.c.l.b16 %v77
    %v310 = vunpack.c.h.b16 %v77
    %v311 = vunpack.c.l.b16 %v78
    %v312 = vunpack.c.h.b16 %v78
    %v313 = vunpack.c.l.b16 %v79
    %v314 = vunpack.c.h.b16 %v79
    %v315 = vunpack.c.l.b16 %v80
    %v316 = vunpack.c.h.b16 %v80
    %v317 = vunpack.c.l.b16 %v81
    %v318 = vunpack.c.h.b16 %v81
    %v319 = vunpack.c.l.b16 %v82
    %v320 = vunpack.c.h.b16 %v82
    %v321 = vunpack.c.l.b16 %v83
    %v322 = vunpack.c.h.b16 %v83
    %v323 = vunpack.c.l.b16 %v84
    %v324 = vunpack.c.h.b16 %v84
    %v325 = vunpack.c.l.b16 %v85
    %v326 = vunpack.c.h.b16 %v85
    %v327 = vunpack.c.l.b16 %v86
    %v328 = vunpack.c.h.b16 %v86
    %v329 = vunpack.c.l.b16 %v87
    %v330 = vunpack.c.h.b16 %v87
    %v331 = vunpack.c.l.b16 %v88
    %v332 = vunpack.c.h.b16 %v88
    %v333 = vunpack.c.l.b16 %v89
    %v334 = vunpack.c.h.b16 %v89
    %v335 = vunpack.c.l.b16 %v90
    %v336 = vunpack.c.h.b16 %v90
    %v337 = vunpack.c.l.b16 %v91
    %v338 = vunpack.c.h.b16 %v91
    %v339 = vpack.c.b16 %v249, %v243
    %v340 = vpack.c.b16 %v250, %v244
    %v341 = vpack.c.b16 %v251, %v245
    %v342 = vpack.c.b16 %v252, %v246
    %v343 = vpack.c.b16 %v253, %v247
    %v344 = vpack.c.b16 %v254, %v248
    %v345 = vpack.c.b16 %v261, %v255
    %v346 = vpack.c.b16 %v262, %v256
    %v347 = vpack.c.b16 %v263, %v257
    %v348 = vpack.c.b16 %v264, %v258
    %v349 = vpack.c.b16 %v265, %v259
    %v350 = vpack.c.b16 %v266, %v260
    %v351 = vpack.c.b16 %v273, %v267
    %v352 = vpack.c.b16 %v274, %v268
    %v353 = vpack.c.b16 %v275, %v269
    %v354 = vpack.c.b16 %v276, %v270
    %v355 = vpack.c.b16 %v277, %v271
    %v356 = vpack.c.b16 %v278, %v272
    %v357 = vpack.c.b16 %v285, %v279
    %v358 = vpack.c.b16 %v286, %v280
    %v359 = vpack.c.b16 %v287, %v281
    %v360 = vpack.c.b16 %v288, %v282
    %v361 = vpack.c.b16 %v289, %v283
    %v362 = vpack.c.b16 %v290, %v284
    %v363 = vpack.c.b16 %v297, %v291
    %v364 = vpack.c.b16 %v298, %v292
    %v365 = vpack.c.b16 %v299, %v293
    %v366 = vpack.c.b16 %v300, %v294
    %v367 = vpack.c.b16 %v301, %v295
    %v368 = vpack.c.b16 %v302, %v296
    %v369 = vpack.c.b16 %v309, %v303
    %v370 = vpack.c.b16 %v310, %v304
    %v371 = vpack.c.b16 %v311, %v305
    %v372 = vpack.c.b16 %v312, %v306
    %v373 = vpack.c.b16 %v313, %v307
    %v374 = vpack.c.b16 %v314, %v308
    %v375 = vpack.c.b16 %v321, %v315
    %v376 = vpack.c.b16 %v322, %v316
    %v377 = vpack.c.b16 %v323, %v317
    %v378 = vpack.c.b16 %v324, %v318
    %v379 = vpack.c.b16 %v325, %v319
    %v380 = vpack.c.b16 %v326, %v320
    %v381 = vpack.c.b16 %v333, %v327
    %v382 = vpack.c.b16 %v334, %v328
    %v383 = vpack.c.b16 %v335, %v329
    %v384 = vpack.c.b16 %v336, %v330
    %v385 = vpack.c.b16 %v337, %v331
    %v386 = vpack.c.b16 %v338, %v332
    %v531 = vunpack.c.l.b16 %v92
    %v532 = vunpack.c.l.b16 %v93
    %v533 = vunpack.c.l.b16 %v94
    %v534 = vunpack.c.l.b16 %v95
    %v535 = vunpack.c.l.b16 %v96
    %v536 = vunpack.c.l.b16 %v97
    %v537 = vunpack.c.l.b16 %v98
    %v538 = vunpack.c.l.b16 %v99
    %v539 = vunpack.c.l.b16 %v100
    %v540 = vunpack.c.l.b16 %v101
    %v541 = vunpack.c.l.b16 %v102
    %v542 = vunpack.c.l.b16 %v103
    %v543 = vunpack.c.l.b16 %v104
    %v544 = vunpack.c.l.b16 %v105
    %v545 = vunpack.c.l.b16 %v106
    %v546 = vunpack.c.l.b16 %v107
    %v547 = vunpack.c.l.b16 %v108
    %v548 = vunpack.c.l.b16 %v109
    %v549 = vunpack.c.l.b16 %v110
    %v550 = vunpack.c.l.b16 %v111
    %v551 = vunpack.c.l.b16 %v112
    %v552 = vunpack.c.l.b16 %v113
    %v553 = vunpack.c.l.b16 %v114
    %v554 = vunpack.c.l.b16 %v115
    %v555 = vunpack.c.l.b16 %v116
    %v556 = vunpack.c.l.b16 %v117
    %v557 = vunpack.c.l.b16 %v118
    %v558 = vunpack.c.l.b16 %v119
    %v559 = vunpack.c.l.b16 %v120
    %v560 = vunpack.c.l.b16 %v121
    %v561 = vunpack.c.l.b16 %v122
    %v562 = vunpack.c.l.b16 %v123
    %v563 = vunpack.c.l.b16 %v124
    %v564 = vunpack.c.l.b16 %v125
    %v565 = vunpack.c.l.b16 %v126
    %v566 = vunpack.c.l.b16 %v127
    %v567 = vunpack.c.l.b16 %v128
    %v568 = vunpack.c.l.b16 %v129
    %v569 = vunpack.c.l.b16 %v130
    %v570 = vunpack.c.l.b16 %v131
    %v571 = vunpack.c.l.b16 %v132
    %v572 = vunpack.c.l.b16 %v133
    %v573 = vunpack.c.l.b16 %v134
    %v574 = vunpack.c.l.b16 %v135
    %v575 = vunpack.c.l.b16 %v136
    %v576 = vunpack.c.l.b16 %v137
    %v577 = vunpack.c.l.b16 %v138
    %v578 = vunpack.c.l.b16 %v139
    %v579 = vunpack.c.l.b16 %v140
    %v580 = vunpack.c.l.b16 %v141
    %v581 = vunpack.c.l.b16 %v142
    %v582 = vunpack.c.l.b16 %v143
    %v583 = vunpack.c.l.b16 %v144
    %v584 = vunpack.c.l.b16 %v145
    %v585 = vunpack.c.l.b16 %v146
    %v586 = vunpack.c.l.b16 %v147
    %v587 = vunpack.c.l.b16 %v148
    %v588 = vunpack.c.l.b16 %v149
    %v589 = vunpack.c.l.b16 %v150
    %v590 = vunpack.c.l.b16 %v151
    %v591 = vunpack.c.l.b16 %v152
    %v592 = vunpack.c.l.b16 %v153
    %v593 = vunpack.c.l.b16 %v154
    %v594 = vunpack.c.l.b16 %v155
    %v595 = vunpack.c.l.b16 %v156
    %v596 = vunpack.c.l.b16 %v157
    %v597 = vunpack.c.l.b16 %v158
    %v598 = vunpack.c.l.b16 %v159
    %v599 = vunpack.c.l.b16 %v160
    %v600 = vunpack.c.l.b16 %v161
    %v601 = vunpack.c.l.b16 %v162
    %v602 = vunpack.c.l.b16 %v163
    %v603 = vunpack.c.l.b16 %v164
    %v604 = vunpack.c.l.b16 %v165
    %v605 = vunpack.c.l.b16 %v166
    %v606 = vunpack.c.l.b16 %v167
    %v607 = vunpack.c.l.b16 %v168
    %v608 = vunpack.c.l.b16 %v169
    %v609 = vunpack.c.l.b16 %v170
    %v610 = vunpack.c.l.b16 %v171
    %v611 = vunpack.c.l.b16 %v172
    %v612 = vunpack.c.l.b16 %v173
    %v613 = vunpack.c.l.b16 %v174
    %v614 = vunpack.c.l.b16 %v175
    %v615 = vunpack.c.l.b16 %v176
    %v616 = vunpack.c.l.b16 %v177
    %v617 = vunpack.c.l.b16 %v178
    %v618 = vunpack.c.l.b16 %v179
    %v619 = vunpack.c.l.b16 %v180
    %v620 = vunpack.c.l.b16 %v181
    %v621 = vunpack.c.l.b16 %v182
    %v622 = vunpack.c.l.b16 %v183
    %v623 = vunpack.c.l.b16 %v184
    %v624 = vunpack.c.l.b16 %v185
    %v625 = vunpack.c.l.b16 %v186
    %v626 = vunpack.c.l.b16 %v187
    %v627 = vpack.c.b16 %v532, %v531
    %v628 = vpack.c.b16 %v534, %v533
    %v629 = vpack.c.b16 %v536, %v535
    %v630 = vpack.c.b16 %v538, %v537
    %v631 = vpack.c.b16 %v540, %v539
    %v632 = vpack.c.b16 %v542, %v541
    %v633 = vpack.c.b16 %v544, %v543
    %v634 = vpack.c.b16 %v546, %v545
    %v635 = vpack.c.b16 %v548, %v547
    %v636 = vpack.c.b16 %v550, %v549
    %v637 = vpack.c.b16 %v552, %v551
    %v638 = vpack.c.b16 %v554, %v553
    %v639 = vpack.c.b16 %v556, %v555
    %v640 = vpack.c.b16 %v558, %v557
    %v641 = vpack.c.b16 %v560, %v559
    %v642 = vpack.c.b16 %v562, %v561
    %v643 = vpack.c.b16 %v564, %v563
    %v644 = vpack.c.b16 %v566, %v565
    %v645 = vpack.c.b16 %v568, %v567
    %v646 = vpack.c.b16 %v570, %v569
    %v647 = vpack.c.b16 %v572, %v571
    %v648 = vpack.c.b16 %v574, %v573
    %v649 = vpack.c.b16 %v576, %v575
    %v650 = vpack.c.b16 %v578, %v577
    %v651 = vpack.c.b16 %v580, %v579
    %v652 = vpack.c.b16 %v582, %v581
    %v653 = vpack.c.b16 %v584, %v583
    %v654 = vpack.c.b16 %v586, %v585
    %v655 = vpack.c.b16 %v588, %v587
    %v656 = vpack.c.b16 %v590, %v589
    %v657 = vpack.c.b16 %v592, %v591
    %v658 = vpack.c.b16 %v594, %v593
    %v659 = vpack.c.b16 %v596, %v595
    %v660 = vpack.c.b16 %v598, %v597
    %v661 = vpack.c.b16 %v600, %v599
    %v662 = vpack.c.b16 %v602, %v601
    %v663 = vpack.c.b16 %v604, %v603
    %v664 = vpack.c.b16 %v606, %v605
    %v665 = vpack.c.b16 %v608, %v607
    %v666 = vpack.c.b16 %v610, %v609
    %v667 = vpack.c.b16 %v612, %v611
    %v668 = vpack.c.b16 %v614, %v613
    %v669 = vpack.c.b16 %v616, %v615
    %v670 = vpack.c.b16 %v618, %v617
    %v671 = vpack.c.b16 %v620, %v619
    %v672 = vpack.c.b16 %v622, %v621
    %v673 = vpack.c.b16 %v624, %v623
    %v674 = vpack.c.b16 %v626, %v625
    %723 = vmatprep.subr.bf16.mxu0 0
    %724 = vmatpush1.bf16.msra.mxu0 %v634
    %725 = vmatprep.subr.bf16.mxu0 0
    %726 = vmatpush1.bf16.msra.mxu0 %v633
    %727 = vmatprep.subr.bf16.mxu0 0
    %728 = vmatpush1.bf16.msra.mxu0 %v632
    %729 = vmatprep.subr.bf16.mxu0 0
    %730 = vmatpush1.bf16.msra.mxu0 %v631
    %731 = vmatprep.subr.bf16.mxu0 0
    %732 = vmatpush1.bf16.msra.mxu0 %v630
    %733 = vmatprep.subr.bf16.mxu0 0
    %734 = vmatpush1.bf16.msra.mxu0 %v629
    %735 = vmatprep.subr.bf16.mxu0 0
    %736 = vmatpush1.bf16.msra.mxu0 %v628
    %737 = vmatprep.subr.bf16.mxu0 0
    %738 = vmatpush1.bf16.msra.mxu0 %v627
    %739 = vmatprep.subr.bf16.mxu0 0
    %740 = vmatpush2.bf16.msra.mxu0 %v642
    %741 = vmatprep.subr.bf16.mxu0 0
    %742 = vmatpush2.bf16.msra.mxu0 %v641
    %743 = vmatprep.subr.bf16.mxu0 0
    %744 = vmatpush2.bf16.msra.mxu0 %v640
    %745 = vmatprep.subr.bf16.mxu0 0
    %746 = vmatpush2.bf16.msra.mxu0 %v639
    %747 = vmatprep.subr.bf16.mxu0 0
    %748 = vmatpush2.bf16.msra.mxu0 %v638
    %749 = vmatprep.subr.bf16.mxu0 0
    %750 = vmatpush2.bf16.msra.mxu0 %v637
    %751 = vmatprep.subr.bf16.mxu0 0
    %752 = vmatpush2.bf16.msra.mxu0 %v636
    %753 = vmatprep.subr.bf16.mxu0 0
    %754 = vmatpush2.bf16.msra.mxu0 %v635
    %755 = vmatprep.mubr.bf16.mxu0 %v340
    %756 = vmatmul.mubr.bf16.gmra.mxu0 %v339
    %v757 = vpop.f32.mrf.mxu0
    %v758 = vadd.f32 %v193, %v757
    %v759 = vpop.f32.mrf.mxu0
    %v760 = vpop.f32.mrf.mxu0
    %v761 = vadd.f32 %v193, %v760
    %v762 = vpop.f32.mrf.mxu0
    %763 = vmatprep.mubr.bf16.mxu0 %v346
    %764 = vmatmul.mubr.bf16.gmra.mxu0 %v345
    %v765 = vpop.f32.mrf.mxu0
    %v766 = vadd.f32 %v193, %v765
    %v767 = vpop.f32.mrf.mxu0
    %v768 = vpop.f32.mrf.mxu0
    %v769 = vadd.f32 %v193, %v768
    %v770 = vpop.f32.mrf.mxu0
    %771 = vmatprep.mubr.bf16.mxu0 %v352
    %772 = vmatmul.mubr.bf16.gmra.mxu0 %v351
    %v773 = vpop.f32.mrf.mxu0
    %v774 = vadd.f32 %v193, %v773
    %v775 = vpop.f32.mrf.mxu0
    %v776 = vpop.f32.mrf.mxu0
    %v777 = vadd.f32 %v193, %v776
    %v778 = vpop.f32.mrf.mxu0
    %779 = vmatprep.mubr.bf16.mxu0 %v358
    %780 = vmatmul.mubr.bf16.gmra.mxu0 %v357
    %v781 = vpop.f32.mrf.mxu0
    %v782 = vadd.f32 %v193, %v781
    %v783 = vpop.f32.mrf.mxu0
    %v784 = vpop.f32.mrf.mxu0
    %v785 = vadd.f32 %v193, %v784
    %v786 = vpop.f32.mrf.mxu0
    %787 = vmatprep.mubr.bf16.mxu0 %v364
    %788 = vmatmul.mubr.bf16.gmra.mxu0 %v363
    %v789 = vpop.f32.mrf.mxu0
    %v790 = vadd.f32 %v193, %v789
    %v791 = vpop.f32.mrf.mxu0
    %v792 = vpop.f32.mrf.mxu0
    %v793 = vadd.f32 %v193, %v792
    %v794 = vpop.f32.mrf.mxu0
    %795 = vmatprep.mubr.bf16.mxu0 %v370
    %796 = vmatmul.mubr.bf16.gmra.mxu0 %v369
    %v797 = vpop.f32.mrf.mxu0
    %v798 = vadd.f32 %v193, %v797
    %v799 = vpop.f32.mrf.mxu0
    %v800 = vpop.f32.mrf.mxu0
    %v801 = vadd.f32 %v193, %v800
    %v802 = vpop.f32.mrf.mxu0
    %803 = vmatprep.mubr.bf16.mxu0 %v376
    %804 = vmatmul.mubr.bf16.gmra.mxu0 %v375
    %v805 = vpop.f32.mrf.mxu0
    %v806 = vadd.f32 %v193, %v805
    %v807 = vpop.f32.mrf.mxu0
    %v808 = vpop.f32.mrf.mxu0
    %v809 = vadd.f32 %v193, %v808
    %v810 = vpop.f32.mrf.mxu0
    %811 = vmatprep.mubr.bf16.mxu0 %v382
    %812 = vmatmul.mubr.bf16.gmra.mxu0 %v381
    %v813 = vpop.f32.mrf.mxu0
    %v814 = vadd.f32 %v193, %v813
    %v815 = vpop.f32.mrf.mxu0
    %v816 = vpop.f32.mrf.mxu0
    %v817 = vadd.f32 %v193, %v816
    %v818 = vpop.f32.mrf.mxu0
    %819 = vdwg.mxu0
    %820 = vmatprep.subr.bf16.mxu0 0
    %821 = vmatpush1.bf16.msra.mxu0 %v650
    %822 = vmatprep.subr.bf16.mxu0 0
    %823 = vmatpush1.bf16.msra.mxu0 %v649
    %824 = vmatprep.subr.bf16.mxu0 0
    %825 = vmatpush1.bf16.msra.mxu0 %v648
    %826 = vmatprep.subr.bf16.mxu0 0
    %827 = vmatpush1.bf16.msra.mxu0 %v647
    %828 = vmatprep.subr.bf16.mxu0 0
    %829 = vmatpush1.bf16.msra.mxu0 %v646
    %830 = vmatprep.subr.bf16.mxu0 0
    %831 = vmatpush1.bf16.msra.mxu0 %v645
    %832 = vmatprep.subr.bf16.mxu0 0
    %833 = vmatpush1.bf16.msra.mxu0 %v644
    %834 = vmatprep.subr.bf16.mxu0 0
    %835 = vmatpush1.bf16.msra.mxu0 %v643
    %836 = vmatprep.subr.bf16.mxu0 0
    %837 = vmatpush2.bf16.msra.mxu0 %v658
    %838 = vmatprep.subr.bf16.mxu0 0
    %839 = vmatpush2.bf16.msra.mxu0 %v657
    %840 = vmatprep.subr.bf16.mxu0 0
    %841 = vmatpush2.bf16.msra.mxu0 %v656
    %842 = vmatprep.subr.bf16.mxu0 0
    %843 = vmatpush2.bf16.msra.mxu0 %v655
    %844 = vmatprep.subr.bf16.mxu0 0
    %845 = vmatpush2.bf16.msra.mxu0 %v654
    %846 = vmatprep.subr.bf16.mxu0 0
    %847 = vmatpush2.bf16.msra.mxu0 %v653
    %848 = vmatprep.subr.bf16.mxu0 0
    %849 = vmatpush2.bf16.msra.mxu0 %v652
    %850 = vmatprep.subr.bf16.mxu0 0
    %851 = vmatpush2.bf16.msra.mxu0 %v651
    %852 = vmatprep.mubr.bf16.mxu0 %v342
    %853 = vmatmul.mubr.bf16.gmra.mxu0 %v341
    %v854 = vpop.f32.mrf.mxu0
    %v855 = vadd.f32 %v758, %v854
    %v856 = vpop.f32.mrf.mxu0
    %v857 = vpop.f32.mrf.mxu0
    %v858 = vadd.f32 %v761, %v857
    %v859 = vpop.f32.mrf.mxu0
    %860 = vmatprep.mubr.bf16.mxu0 %v348
    %861 = vmatmul.mubr.bf16.gmra.mxu0 %v347
    %v862 = vpop.f32.mrf.mxu0
    %v863 = vadd.f32 %v766, %v862
    %v864 = vpop.f32.mrf.mxu0
    %v865 = vpop.f32.mrf.mxu0
    %v866 = vadd.f32 %v769, %v865
    %v867 = vpop.f32.mrf.mxu0
    %868 = vmatprep.mubr.bf16.mxu0 %v354
    %869 = vmatmul.mubr.bf16.gmra.mxu0 %v353
    %v870 = vpop.f32.mrf.mxu0
    %v871 = vadd.f32 %v774, %v870
    %v872 = vpop.f32.mrf.mxu0
    %v873 = vpop.f32.mrf.mxu0
    %v874 = vadd.f32 %v777, %v873
    %v875 = vpop.f32.mrf.mxu0
    %876 = vmatprep.mubr.bf16.mxu0 %v360
    %877 = vmatmul.mubr.bf16.gmra.mxu0 %v359
    %v878 = vpop.f32.mrf.mxu0
    %v879 = vadd.f32 %v782, %v878
    %v880 = vpop.f32.mrf.mxu0
    %v881 = vpop.f32.mrf.mxu0
    %v882 = vadd.f32 %v785, %v881
    %v883 = vpop.f32.mrf.mxu0
    %884 = vmatprep.mubr.bf16.mxu0 %v366
    %885 = vmatmul.mubr.bf16.gmra.mxu0 %v365
    %v886 = vpop.f32.mrf.mxu0
    %v887 = vadd.f32 %v790, %v886
    %v888 = vpop.f32.mrf.mxu0
    %v889 = vpop.f32.mrf.mxu0
    %v890 = vadd.f32 %v793, %v889
    %v891 = vpop.f32.mrf.mxu0
    %892 = vmatprep.mubr.bf16.mxu0 %v372
    %893 = vmatmul.mubr.bf16.gmra.mxu0 %v371
    %v894 = vpop.f32.mrf.mxu0
    %v895 = vadd.f32 %v798, %v894
    %v896 = vpop.f32.mrf.mxu0
    %v897 = vpop.f32.mrf.mxu0
    %v898 = vadd.f32 %v801, %v897
    %v899 = vpop.f32.mrf.mxu0
    %900 = vmatprep.mubr.bf16.mxu0 %v378
    %901 = vmatmul.mubr.bf16.gmra.mxu0 %v377
    %v902 = vpop.f32.mrf.mxu0
    %v903 = vadd.f32 %v806, %v902
    %v904 = vpop.f32.mrf.mxu0
    %v905 = vpop.f32.mrf.mxu0
    %v906 = vadd.f32 %v809, %v905
    %v907 = vpop.f32.mrf.mxu0
    %908 = vmatprep.mubr.bf16.mxu0 %v384
    %909 = vmatmul.mubr.bf16.gmra.mxu0 %v383
    %v910 = vpop.f32.mrf.mxu0
    %v911 = vadd.f32 %v814, %v910
    %v912 = vpop.f32.mrf.mxu0
    %v913 = vpop.f32.mrf.mxu0
    %v914 = vadd.f32 %v817, %v913
    %v915 = vpop.f32.mrf.mxu0
    %916 = vdwg.mxu0
    %917 = vmatprep.subr.bf16.mxu0 0
    %918 = vmatpush1.bf16.msra.mxu0 %v666
    %919 = vmatprep.subr.bf16.mxu0 0
    %920 = vmatpush1.bf16.msra.mxu0 %v665
    %921 = vmatprep.subr.bf16.mxu0 0
    %922 = vmatpush1.bf16.msra.mxu0 %v664
    %923 = vmatprep.subr.bf16.mxu0 0
    %924 = vmatpush1.bf16.msra.mxu0 %v663
    %925 = vmatprep.subr.bf16.mxu0 0
    %926 = vmatpush1.bf16.msra.mxu0 %v662
    %927 = vmatprep.subr.bf16.mxu0 0
    %928 = vmatpush1.bf16.msra.mxu0 %v661
    %929 = vmatprep.subr.bf16.mxu0 0
    %930 = vmatpush1.bf16.msra.mxu0 %v660
    %931 = vmatprep.subr.bf16.mxu0 0
    %932 = vmatpush1.bf16.msra.mxu0 %v659
    %933 = vmatprep.subr.bf16.mxu0 0
    %934 = vmatpush2.bf16.msra.mxu0 %v674
    %935 = vmatprep.subr.bf16.mxu0 0
    %936 = vmatpush2.bf16.msra.mxu0 %v673
    %937 = vmatprep.subr.bf16.mxu0 0
    %938 = vmatpush2.bf16.msra.mxu0 %v672
    %939 = vmatprep.subr.bf16.mxu0 0
    %940 = vmatpush2.bf16.msra.mxu0 %v671
    %941 = vmatprep.subr.bf16.mxu0 0
    %942 = vmatpush2.bf16.msra.mxu0 %v670
    %943 = vmatprep.subr.bf16.mxu0 0
    %944 = vmatpush2.bf16.msra.mxu0 %v669
    %945 = vmatprep.subr.bf16.mxu0 0
    %946 = vmatpush2.bf16.msra.mxu0 %v668
    %947 = vmatprep.subr.bf16.mxu0 0
    %948 = vmatpush2.bf16.msra.mxu0 %v667
    %949 = vmatprep.mubr.bf16.mxu0 %v344
    %950 = vmatmul.mubr.bf16.gmra.mxu0 %v343
    %v951 = vpop.f32.mrf.mxu0
    %v952 = vadd.f32 %v855, %v951
    %v953 = vpop.f32.mrf.mxu0
    %v954 = vpop.f32.mrf.mxu0
    %v955 = vadd.f32 %v858, %v954
    %v956 = vpop.f32.mrf.mxu0
    %957 = vmatprep.mubr.bf16.mxu0 %v350
    %958 = vmatmul.mubr.bf16.gmra.mxu0 %v349
    %v959 = vpop.f32.mrf.mxu0
    %v960 = vadd.f32 %v863, %v959
    %v961 = vpop.f32.mrf.mxu0
    %v962 = vpop.f32.mrf.mxu0
    %v963 = vadd.f32 %v866, %v962
    %v964 = vpop.f32.mrf.mxu0
    %965 = vmatprep.mubr.bf16.mxu0 %v356
    %966 = vmatmul.mubr.bf16.gmra.mxu0 %v355
    %v967 = vpop.f32.mrf.mxu0
    %v968 = vadd.f32 %v871, %v967
    %v969 = vpop.f32.mrf.mxu0
    %v970 = vpop.f32.mrf.mxu0
    %v971 = vadd.f32 %v874, %v970
    %v972 = vpop.f32.mrf.mxu0
    %973 = vmatprep.mubr.bf16.mxu0 %v362
    %974 = vmatmul.mubr.bf16.gmra.mxu0 %v361
    %v975 = vpop.f32.mrf.mxu0
    %v976 = vadd.f32 %v879, %v975
    %v977 = vpop.f32.mrf.mxu0
    %v978 = vpop.f32.mrf.mxu0
    %v979 = vadd.f32 %v882, %v978
    %v980 = vpop.f32.mrf.mxu0
    %981 = vmatprep.mubr.bf16.mxu0 %v368
    %982 = vmatmul.mubr.bf16.gmra.mxu0 %v367
    %v983 = vpop.f32.mrf.mxu0
    %v984 = vadd.f32 %v887, %v983
    %v985 = vpop.f32.mrf.mxu0
    %v986 = vpop.f32.mrf.mxu0
    %v987 = vadd.f32 %v890, %v986
    %v988 = vpop.f32.mrf.mxu0
    %989 = vmatprep.mubr.bf16.mxu0 %v374
    %990 = vmatmul.mubr.bf16.gmra.mxu0 %v373
    %v991 = vpop.f32.mrf.mxu0
    %v992 = vadd.f32 %v895, %v991
    %v993 = vpop.f32.mrf.mxu0
    %v994 = vpop.f32.mrf.mxu0
    %v995 = vadd.f32 %v898, %v994
    %v996 = vpop.f32.mrf.mxu0
    %997 = vmatprep.mubr.bf16.mxu0 %v380
    %998 = vmatmul.mubr.bf16.gmra.mxu0 %v379
    %v999 = vpop.f32.mrf.mxu0
    %v1000 = vadd.f32 %v903, %v999
    %v1001 = vpop.f32.mrf.mxu0
    %v1002 = vpop.f32.mrf.mxu0
    %v1003 = vadd.f32 %v906, %v1002
    %v1004 = vpop.f32.mrf.mxu0
    %1005 = vmatprep.mubr.bf16.mxu0 %v386
    %1006 = vmatmul.mubr.bf16.gmra.mxu0 %v385
    %v1007 = vpop.f32.mrf.mxu0
    %v1008 = vadd.f32 %v911, %v1007
    %v1009 = vpop.f32.mrf.mxu0
    %v1010 = vpop.f32.mrf.mxu0
    %v1011 = vadd.f32 %v914, %v1010
    %v1012 = vpop.f32.mrf.mxu0
    %1013 = vdwg.mxu0
    %1014 = vst [vmem:[#allocation7] sm:$0xff] %v952
    %1015 = vst [vmem:[#allocation7 + $0x8] sm:$0xff] %v955
    %1016 = vst [vmem:[#allocation7 + $0x10] sm:$0xff] %v960
    %1017 = vst [vmem:[#allocation7 + $0x18] sm:$0xff] %v963
    %1018 = vst [vmem:[#allocation7 + $0x20] sm:$0xff] %v968
    %1019 = vst [vmem:[#allocation7 + $0x28] sm:$0xff] %v971
    %1020 = vst [vmem:[#allocation7 + $0x30] sm:$0xff] %v976
    %1021 = vst [vmem:[#allocation7 + $0x38] sm:$0xff] %v979
    %1022 = vst [vmem:[#allocation7 + $0x40] sm:$0xff] %v984
    %1023 = vst [vmem:[#allocation7 + $0x48] sm:$0xff] %v987
    %1024 = vst [vmem:[#allocation7 + $0x50] sm:$0xff] %v992
    %1025 = vst [vmem:[#allocation7 + $0x58] sm:$0xff] %v995
    %1026 = vst [vmem:[#allocation7 + $0x60] sm:$0xff] %v1000
    %1027 = vst [vmem:[#allocation7 + $0x68] sm:$0xff] %v1003
    %1028 = vst [vmem:[#allocation7 + $0x70] sm:$0xff] %v1008
    %1029 = vst [vmem:[#allocation7 + $0x78] sm:$0xff] %v1011
    // Predicated region
    $region22: #{tpu_custom_call.1} parent=1 // pred_check
      _
    $region23: #{tpu_custom_call.1} parent=1 // pred_check_branch
      %1031 = sbr.rel (0) target = $region25
    $region24: #{tpu_custom_call.1} parent=1 // pred_region
      %s1033 = ssub.s32 2048, 2048
      %1034 = vsyncadd [#allocation4], %s1033
      %s1035 = sshll.u32 [#allocation7], 4
      %s1036 = int_to_ptr.vmem [resolvable:$true] %s1035
      %1041 = dma.vmem_to_hbm [thread:$0]  %s1036, 2048, %s3, [#allocation4], 128, 128, 8
    $region25: #{tpu_custom_call.1} parent=1 // pred_fallthru
      _
    // Predicated region
    $region26: #{tpu_custom_call.1} parent=1 // pred_check
      _
    $region27: #{tpu_custom_call.1} parent=1 // pred_check_branch
      %1043 = sbr.rel (0) target = $region29
    $region28: #{tpu_custom_call.1} parent=1 // pred_region
      %1044 = dma.done [#allocation4], 2048
    $region29: #{tpu_custom_call.1} parent=1 // pred_fallthru
      _
    %1045 = vsyncpa [#allocation3], 1
    %1046 = vsyncpa [#allocation6], 1
    %1047 = vsyncpa [#allocation4], 1

</llo_original>
